<compile_context>
chip_gen: v7x
topology: tpu7x:2x2x1
jax: 0.10.0
libtpu: 0.0.40
codegen_flags: <defaults>
</compile_context>

<pallas_src>
import jax
import jax.numpy as jnp
from jax.experimental import pallas as pl
from jax.experimental.pallas import tpu as pltpu


STRIDE = 2
K = 3
DILATION = 1
# padding = ((stride - 1) // 2, dilation * (kernel_size - 1) // 2) = (0, 1)
PAD_H = (STRIDE - 1) // 2
PAD_W = DILATION * (K - 1) // 2


def _round_up(v, m):
    return ((v + m - 1) // m) * m


def _cdiv(a, b):
    return -(-a // b)


def _convt_sigmoid_kernel(x_ref, cmix_ref, rmix_ref, b_ref, o_ref):
    # x_ref   : (NB, H_PAD, W_PAD)            f32 VMEM (zero-padded input)
    # cmix_ref: (K, W_PAD, OW_PAD)            f32 VMEM (resident; column mixing)
    # rmix_ref: (K, NB*OH_PAD, NB*H_PAD)      f32 VMEM (resident; row placement)
    # b_ref   : (1,)                          f32 SMEM (bias)
    # o_ref   : (NB, OH_PAD, OW_PAD)          f32 VMEM
    nb, hp, wp = x_ref.shape
    _, ohp, owp = o_ref.shape
    k = cmix_ref.shape[0]

    # Stack the NB images along sublanes (layout-preserving reshape: each
    # image tile is already (8, 128)).
    x = x_ref[...].reshape(nb * hp, wp)

    acc = jnp.zeros((nb * ohp, owp), jnp.float32)
    for kh in range(k):
        # Column ("lane") mixing on the MXU: (NB*8, 128) @ (128, 128).
        tmp = jnp.dot(x, cmix_ref[kh], preferred_element_type=jnp.float32)
        # Row ("sublane") placement on the MXU: block-diag (NB*8, NB*8) LHS.
        acc = acc + jnp.dot(rmix_ref[kh], tmp,
                            preferred_element_type=jnp.float32)

    # Single unmasked, lane-dense store (OW_PAD is a multiple of 128).
    o_ref[...] = jax.nn.sigmoid(acc + b_ref[0]).reshape(nb, ohp, owp)


def conv_transpose2d_sigmoid(x, weight, bias):
    """x: (N, 1, H, W); weight: (1, 1, K, K); bias: (1,). Returns (N, 1, OH, OW)."""
    N, C, H, W = x.shape
    assert C == 1, "Cin == Cout == 1 only (no channel contraction needed)."
    OH = (H - 1) * STRIDE - 2 * PAD_H + DILATION * (K - 1) + 1
    OW = (W - 1) * STRIDE - 2 * PAD_W + DILATION * (K - 1) + 1

    H_PAD = _round_up(H, 8)
    W_PAD = _round_up(W, 128)
    OH_PAD = _round_up(OH, 8)
    OW_PAD = _round_up(OW, 128)

    # ---- batch blocking: NB images per grid step, >=2 steps when N >= 2 ----
    NB_MAX = 8
    num_steps = _cdiv(N, NB_MAX)
    if N >= 2:
        num_steps = max(num_steps, 2)
    NB = _cdiv(N, num_steps)
    N_pad = NB * num_steps

    in_dtype = x.dtype
    x2 = x[:, 0].astype(jnp.float32)                                  # (N, H, W)
    x_pad = jnp.pad(x2, ((0, N_pad - N), (0, H_PAD - H), (0, W_PAD - W)))

    w2d = weight.reshape(K, K).astype(jnp.float32)
    b = bias.astype(jnp.float32)                                      # (1,) -> SMEM

    # ---- precompute the K weighted column-mixing matrices (one-time) -------
    # cmix[kh][iw, ow] = sum_kw w[kh, kw] * [ow == iw*STRIDE - PAD_W + kw]
    # (no iw < W mask needed: padded input columns are zero.)
    iw = jnp.arange(W_PAD, dtype=jnp.int32)[:, None]
    ow = jnp.arange(OW_PAD, dtype=jnp.int32)[None, :]
    d = ow - (iw * STRIDE - PAD_W)                                    # (W_PAD, OW_PAD)
    bands = jnp.stack([(d == kw).astype(jnp.float32) for kw in range(K)])
    cmix = jnp.tensordot(w2d, bands, axes=([1], [0]))                 # (K, W_PAD, OW_PAD)

    # ---- precompute the K row-placement matrices, block-diag over NB -------
    # rmix[kh][oh, ih] = [oh == ih*STRIDE - PAD_H + kh]
    oh_idx = jnp.arange(OH_PAD, dtype=jnp.int32)[:, None]
    ih_idx = jnp.arange(H_PAD, dtype=jnp.int32)[None, :]
    eye_nb = jnp.eye(NB, dtype=jnp.float32)
    rmix = jnp.stack([
        jnp.kron(eye_nb,
                 (oh_idx == ih_idx * STRIDE - PAD_H + kh).astype(jnp.float32))
        for kh in range(K)
    ])                                                                # (K, NB*OH_PAD, NB*H_PAD)

    out_pad = pl.pallas_call(
        _convt_sigmoid_kernel,
        grid=(num_steps,),
        out_shape=jax.ShapeDtypeStruct((N_pad, OH_PAD, OW_PAD), jnp.float32),
        in_specs=[
            pl.BlockSpec((NB, H_PAD, W_PAD), lambda n: (n, 0, 0)),
            # Constant index maps -> blocks stay resident, DMA'd once.
            pl.BlockSpec((K, W_PAD, OW_PAD), lambda n: (0, 0, 0)),
            pl.BlockSpec((K, NB * OH_PAD, NB * H_PAD), lambda n: (0, 0, 0)),
            pl.BlockSpec(memory_space=pltpu.MemorySpace.SMEM),
        ],
        out_specs=pl.BlockSpec((NB, OH_PAD, OW_PAD), lambda n: (n, 0, 0)),
        compiler_params=pltpu.CompilerParams(
            dimension_semantics=("parallel",)),
    )(x_pad, cmix, rmix, b)

    return out_pad[:N, :OH, :OW][:, None].astype(in_dtype)            # (N, 1, OH, OW)


def _reference(x, weight, bias):
    """Direct (loop) ConvTranspose2d + sigmoid reference."""
    import numpy as np
    x = np.asarray(x, dtype=np.float64)
    w = np.asarray(weight, dtype=np.float64)[0, 0]
    b = float(np.asarray(bias)[0])
    N, _, H, W = x.shape
    OH = (H - 1) * STRIDE - 2 * PAD_H + K
    OW = (W - 1) * STRIDE - 2 * PAD_W + K
    y = np.full((N, 1, OH, OW), b, dtype=np.float64)
    for n in range(N):
        for ih in range(H):
            for iw in range(W):
                for kh in range(K):
                    for kw in range(K):
                        oh = ih * STRIDE - PAD_H + kh
                        ow = iw * STRIDE - PAD_W + kw
                        if 0 <= oh < OH and 0 <= ow < OW:
                            y[n, 0, oh, ow] += x[n, 0, ih, iw] * w[kh, kw]
    return 1.0 / (1.0 + np.exp(-y))


if __name__ == "__main__":
    import numpy as np

    key = jax.random.PRNGKey(0)
    kx, kw_, kb = jax.random.split(key, 3)

    # Module input: x1 = torch.randn(1, 1, 3, 3)
    x1 = jax.random.normal(kx, (1, 1, 3, 3), dtype=jnp.float32)
    # Deterministic ConvTranspose2d params: weight (Cin, Cout, K, K), bias (Cout,)
    weight = 0.3 * jax.random.normal(kw_, (1, 1, K, K), dtype=jnp.float32)
    bias = 0.1 * jax.random.normal(kb, (1,), dtype=jnp.float32)

    out = jax.block_until_ready(conv_transpose2d_sigmoid(x1, weight, bias))
    assert out.shape == (1, 1, 7, 5), out.shape
    np.testing.assert_allclose(np.asarray(out), _reference(x1, weight, bias),
                               rtol=1e-5, atol=1e-5)

    # Batched call to exercise multi-step "parallel" grid + NB batch blocking.
    xb = jax.random.normal(kb, (3, 1, 3, 3), dtype=jnp.float32)
    outb = jax.block_until_ready(conv_transpose2d_sigmoid(xb, weight, bias))
    assert outb.shape == (3, 1, 7, 5), outb.shape
    np.testing.assert_allclose(np.asarray(outb), _reference(xb, weight, bias),
                               rtol=1e-5, atol=1e-5)

    print("KERNEL_OK")
</pallas_src>

<mosaic_0001>
module attributes {stable_mosaic.version = 11 : i64} {
  func.func @_convt_sigmoid_kernel(%arg0: i32, %arg1: memref<1x8x128xf32, #tpu.memory_space<vmem>>, %arg2: memref<3x128x128xf32, #tpu.memory_space<vmem>>, %arg3: memref<3x8x8xf32, #tpu.memory_space<vmem>>, %arg4: memref<1xf32, #tpu.memory_space<smem>>, %arg5: memref<1x8x128xf32, #tpu.memory_space<vmem>>) attributes {dimension_semantics = [#tpu.dimension_semantics<parallel>], iteration_bounds = array<i64: 1>, scalar_prefetch = 0 : i64, scratch_operands = 0 : i64, tpu.core_type = #tpu.core_type<tc>, window_params = [{transform_indices = @transform_0, window_bounds = array<i64: 1, 8, 128>}, {pipeline_mode = #tpu.pipeline_mode<synchronous>, transform_indices = @transform_1, window_bounds = array<i64: 3, 128, 128>}, {pipeline_mode = #tpu.pipeline_mode<synchronous>, transform_indices = @transform_2, window_bounds = array<i64: 3, 8, 8>}, {transform_indices = @transform_3, window_bounds = array<i64: 1>}, {transform_indices = @transform_4, window_bounds = array<i64: 1, 8, 128>}]} {
    %c0 = arith.constant 0 : index
    %c0_0 = arith.constant 0 : index
    %c0_1 = arith.constant 0 : index
    %0 = vector.load %arg1[%c0, %c0_0, %c0_1] : memref<1x8x128xf32, #tpu.memory_space<vmem>>, vector<1x8x128xf32>
    %1 = vector.shape_cast %0 : vector<1x8x128xf32> to vector<8x128xf32>
    %cst = arith.constant 0.000000e+00 : f32
    %2 = vector.broadcast %cst : f32 to vector<8x128xf32>
    %c0_2 = arith.constant 0 : index
    %c0_3 = arith.constant 0 : index
    %c0_4 = arith.constant 0 : index
    %3 = vector.load %arg2[%c0_2, %c0_3, %c0_4] : memref<3x128x128xf32, #tpu.memory_space<vmem>>, vector<1x128x128xf32>
    %4 = vector.shape_cast %3 : vector<1x128x128xf32> to vector<128x128xf32>
    %cst_5 = arith.constant dense<0.000000e+00> : vector<8x128xf32>
    %5 = tpu.matmul %1, %4, %cst_5 {dimension_numbers = #tpu.dot_dimension_numbers<[1], [0], [0], [1], [0, 0, 1, 1], [], []>} : vector<8x128xf32>, vector<128x128xf32>, vector<8x128xf32> -> vector<8x128xf32>
    %c0_6 = arith.constant 0 : index
    %c0_7 = arith.constant 0 : index
    %c0_8 = arith.constant 0 : index
    %6 = vector.load %arg3[%c0_6, %c0_7, %c0_8] : memref<3x8x8xf32, #tpu.memory_space<vmem>>, vector<1x8x8xf32>
    %7 = vector.shape_cast %6 : vector<1x8x8xf32> to vector<8x8xf32>
    %cst_9 = arith.constant dense<0.000000e+00> : vector<8x128xf32>
    %8 = tpu.matmul %7, %5, %cst_9 {dimension_numbers = #tpu.dot_dimension_numbers<[1], [0], [0], [1], [0, 0, 1, 1], [], []>} : vector<8x8xf32>, vector<8x128xf32>, vector<8x128xf32> -> vector<8x128xf32>
    %9 = arith.addf %2, %8 : vector<8x128xf32>
    %c1 = arith.constant 1 : index
    %c0_10 = arith.constant 0 : index
    %c0_11 = arith.constant 0 : index
    %10 = vector.load %arg2[%c1, %c0_10, %c0_11] : memref<3x128x128xf32, #tpu.memory_space<vmem>>, vector<1x128x128xf32>
    %11 = vector.shape_cast %10 : vector<1x128x128xf32> to vector<128x128xf32>
    %cst_12 = arith.constant dense<0.000000e+00> : vector<8x128xf32>
    %12 = tpu.matmul %1, %11, %cst_12 {dimension_numbers = #tpu.dot_dimension_numbers<[1], [0], [0], [1], [0, 0, 1, 1], [], []>} : vector<8x128xf32>, vector<128x128xf32>, vector<8x128xf32> -> vector<8x128xf32>
    %c1_13 = arith.constant 1 : index
    %c0_14 = arith.constant 0 : index
    %c0_15 = arith.constant 0 : index
    %13 = vector.load %arg3[%c1_13, %c0_14, %c0_15] : memref<3x8x8xf32, #tpu.memory_space<vmem>>, vector<1x8x8xf32>
    %14 = vector.shape_cast %13 : vector<1x8x8xf32> to vector<8x8xf32>
    %cst_16 = arith.constant dense<0.000000e+00> : vector<8x128xf32>
    %15 = tpu.matmul %14, %12, %cst_16 {dimension_numbers = #tpu.dot_dimension_numbers<[1], [0], [0], [1], [0, 0, 1, 1], [], []>} : vector<8x8xf32>, vector<8x128xf32>, vector<8x128xf32> -> vector<8x128xf32>
    %16 = arith.addf %9, %15 : vector<8x128xf32>
    %c2 = arith.constant 2 : index
    %c0_17 = arith.constant 0 : index
    %c0_18 = arith.constant 0 : index
    %17 = vector.load %arg2[%c2, %c0_17, %c0_18] : memref<3x128x128xf32, #tpu.memory_space<vmem>>, vector<1x128x128xf32>
    %18 = vector.shape_cast %17 : vector<1x128x128xf32> to vector<128x128xf32>
    %cst_19 = arith.constant dense<0.000000e+00> : vector<8x128xf32>
    %19 = tpu.matmul %1, %18, %cst_19 {dimension_numbers = #tpu.dot_dimension_numbers<[1], [0], [0], [1], [0, 0, 1, 1], [], []>} : vector<8x128xf32>, vector<128x128xf32>, vector<8x128xf32> -> vector<8x128xf32>
    %c2_20 = arith.constant 2 : index
    %c0_21 = arith.constant 0 : index
    %c0_22 = arith.constant 0 : index
    %20 = vector.load %arg3[%c2_20, %c0_21, %c0_22] : memref<3x8x8xf32, #tpu.memory_space<vmem>>, vector<1x8x8xf32>
    %21 = vector.shape_cast %20 : vector<1x8x8xf32> to vector<8x8xf32>
    %cst_23 = arith.constant dense<0.000000e+00> : vector<8x128xf32>
    %22 = tpu.matmul %21, %19, %cst_23 {dimension_numbers = #tpu.dot_dimension_numbers<[1], [0], [0], [1], [0, 0, 1, 1], [], []>} : vector<8x8xf32>, vector<8x128xf32>, vector<8x128xf32> -> vector<8x128xf32>
    %23 = arith.addf %16, %22 : vector<8x128xf32>
    %c0_24 = arith.constant 0 : index
    %24 = memref.load %arg4[%c0_24] : memref<1xf32, #tpu.memory_space<smem>>
    %25 = vector.broadcast %24 : f32 to vector<8x128xf32>
    %26 = arith.addf %23, %25 : vector<8x128xf32>
    %27 = arith.negf %26 : vector<8x128xf32>
    %28 = math.exp %27 : vector<8x128xf32>
    %cst_25 = arith.constant 1.000000e+00 : f32
    %29 = vector.broadcast %cst_25 : f32 to vector<8x128xf32>
    %30 = arith.addf %29, %28 : vector<8x128xf32>
    %31 = arith.divf %29, %30 : vector<8x128xf32>
    %32 = vector.shape_cast %31 : vector<8x128xf32> to vector<1x8x128xf32>
    %c0_26 = arith.constant 0 : index
    %c0_27 = arith.constant 0 : index
    %c0_28 = arith.constant 0 : index
    %33 = vector.load %arg5[%c0_26, %c0_27, %c0_28] : memref<1x8x128xf32, #tpu.memory_space<vmem>>, vector<1x8x128xf32>
    tpu.vector_store %arg5[%c0_26, %c0_27, %c0_28], %32 {strides = array<i32>} : memref<1x8x128xf32, #tpu.memory_space<vmem>>, vector<1x8x128xf32>,
    return
  }
  func.func @transform_0(%arg0: i32) -> (i32, i32, i32) {
    %c0_i32 = arith.constant 0 : i32
    %c0_i32_0 = arith.constant 0 : i32
    %c0_i32_1 = arith.constant 0 : i32
    return %arg0, %c0_i32, %c0_i32_0 : i32, i32, i32
  }
  func.func @transform_1(%arg0: i32) -> (i32, i32, i32) {
    %c0_i32 = arith.constant 0 : i32
    %c0_i32_0 = arith.constant 0 : i32
    %c0_i32_1 = arith.constant 0 : i32
    %c0_i32_2 = arith.constant 0 : i32
    return %c0_i32, %c0_i32_0, %c0_i32_1 : i32, i32, i32
  }
  func.func @transform_2(%arg0: i32) -> (i32, i32, i32) {
    %c0_i32 = arith.constant 0 : i32
    %c0_i32_0 = arith.constant 0 : i32
    %c0_i32_1 = arith.constant 0 : i32
    %c0_i32_2 = arith.constant 0 : i32
    return %c0_i32, %c0_i32_0, %c0_i32_1 : i32, i32, i32
  }
  func.func @transform_3(%arg0: i32) -> i32 {
    %c0_i32 = arith.constant 0 : i32
    %c0_i32_0 = arith.constant 0 : i32
    return %c0_i32 : i32
  }
  func.func @transform_4(%arg0: i32) -> (i32, i32, i32) {
    %c0_i32 = arith.constant 0 : i32
    %c0_i32_0 = arith.constant 0 : i32
    %c0_i32_1 = arith.constant 0 : i32
    return %arg0, %c0_i32, %c0_i32_0 : i32, i32, i32
  }
}

</mosaic_0001>

<llo_original>
// kernel: tpu_custom_call.1
$region0: #{tpu_custom_call.1}
  #allocation0 [shape = 'u32[]', space=smem, size = 0x4, offset = 0x4, fixed_abs, tag = 'smem constant byte address 0x4 - core index']
  #allocation1 [shape = 'u32[144,128]{1,0:T(1,128)}', space=vmem, size = 0x12000, scoped, tag = 'internal scratch']
  #allocation2 [shape = 'f32[1]{0:T(128)S(6)}', space=smem, size = 0x200, scoped, tag = 'scoped memory for tpu_custom_call.1']
  %s0 = inlined_call_operand.hbm [shape: f32[1,8,128], index: 0, kind: input, shape index: {}]
  %s1 = inlined_call_operand.hbm [shape: f32[3,128,128], index: 1, kind: input, shape index: {}]
  %s2 = inlined_call_operand.hbm [shape: f32[3,8,8], index: 2, kind: input, shape index: {}]
  %s3 = inlined_call_operand.<no memory space> [shape: f32[1], index: 3, kind: input, shape index: {}]
  %s4 = inlined_call_operand.hbm [shape: f32[1,8,128], index: 4, kind: output, shape index: {}]
  %s5 = sld [smem:[#allocation0]]
  $region38: #{tpu_custom_call.1} parent=0
    _
  %s7 = ssub.s32 1, %s5
  %s8 = scalar_select 0, %s7, %s5
  %9 = sst [smem:[#allocation2]] %s3
  $region1: #{tpu_custom_call.1} parent=0
    #allocation3 [shape = 'u8[4096]{0}', space=vmem, size = 0x1000, scoped, tag = 'input window, operand 0, single buffered']
    #allocation4 [shape = 's32[1]{0}', space=sflag, size = 0x4, scoped, tag = 'scoped memory for tpu_custom_call.1']
    #allocation5 [shape = 's32[1]{0}', space=sflag, size = 0x4, scoped, tag = 'scoped memory for tpu_custom_call.1']
    #allocation6 [shape = 'u8[196608]{0}', space=vmem, size = 0x30000, scoped, tag = 'input window, operand 1, single buffered']
    #allocation7 [shape = 's32[1]{0}', space=sflag, size = 0x4, scoped, tag = 'scoped memory for tpu_custom_call.1']
    #allocation8 [shape = 'u8[12288]{0}', space=vmem, size = 0x3000, scoped, tag = 'input window, operand 2, single buffered']
    #allocation9 [shape = 'u8[4096]{0}', space=vmem, size = 0x1000, scoped, tag = 'output window, operand 0, single buffered']
    %10 = vsyncpa [#allocation4], 0
    %11 = vsyncpa [#allocation7], 0
    %12 = vsyncpa [#allocation5], 0
    // Predicated region
    $region2: #{tpu_custom_call.1} parent=1 // pred_check
      _
    $region3: #{tpu_custom_call.1} parent=1 // pred_check_branch
      %14 = sbr.rel (0) target = $region5
    $region4: #{tpu_custom_call.1} parent=1 // pred_region
      %s16 = ssub.s32 128, 128
      %17 = vsyncadd [#allocation4], %s16
      %s19 = sshll.u32 [#allocation3], 4
      %s20 = int_to_ptr.vmem [resolvable:$true] %s19
      %22 = dma.hbm_to_vmem [thread:$0]  %s0, 128, %s20, [#allocation4]
    $region5: #{tpu_custom_call.1} parent=1 // pred_fallthru
      _
    // Predicated region
    $region6: #{tpu_custom_call.1} parent=1 // pred_check
      _
    $region7: #{tpu_custom_call.1} parent=1 // pred_check_branch
      %24 = sbr.rel (0) target = $region9
    $region8: #{tpu_custom_call.1} parent=1 // pred_region
      %s26 = ssub.s32 6144, 6144
      %27 = vsyncadd [#allocation7], %s26
      %s28 = sshll.u32 [#allocation6], 4
      %s29 = int_to_ptr.vmem [resolvable:$true] %s28
      %34 = dma.hbm_to_vmem [thread:$0]  %s1, 6144, %s29, [#allocation7], 128, 128, 8
    $region9: #{tpu_custom_call.1} parent=1 // pred_fallthru
      _
    // Predicated region
    $region10: #{tpu_custom_call.1} parent=1 // pred_check
      _
    $region11: #{tpu_custom_call.1} parent=1 // pred_check_branch
      %36 = sbr.rel (0) target = $region13
    $region12: #{tpu_custom_call.1} parent=1 // pred_region
      %s38 = ssub.s32 384, 384
      %39 = vsyncadd [#allocation7], %s38
      %s40 = sshll.u32 [#allocation8], 4
      %s41 = int_to_ptr.vmem [resolvable:$true] %s40
      %46 = dma.hbm_to_vmem [thread:$0]  %s2, 384, %s41, [#allocation7], 128, 128, 8
    $region13: #{tpu_custom_call.1} parent=1 // pred_fallthru
      _
    // Predicated region
    $region14: #{tpu_custom_call.1} parent=1 // pred_check
      _
    $region15: #{tpu_custom_call.1} parent=1 // pred_check_branch
      %48 = sbr.rel (0) target = $region17
    $region16: #{tpu_custom_call.1} parent=1 // pred_region
      _
    $region17: #{tpu_custom_call.1} parent=1 // pred_fallthru
      _
    // Predicated region
    $region18: #{tpu_custom_call.1} parent=1 // pred_check
      _
    $region19: #{tpu_custom_call.1} parent=1 // pred_check_branch
      %50 = sbr.rel (0) target = $region21
    $region20: #{tpu_custom_call.1} parent=1 // pred_region
      %51 = dma.done [#allocation4], 128
    $region21: #{tpu_custom_call.1} parent=1 // pred_fallthru
      _
    // Predicated region
    $region22: #{tpu_custom_call.1} parent=1 // pred_check
      _
    $region23: #{tpu_custom_call.1} parent=1 // pred_check_branch
      %53 = sbr.rel (0) target = $region25
    $region24: #{tpu_custom_call.1} parent=1 // pred_region
      %54 = dma.done [#allocation7], 6144
    $region25: #{tpu_custom_call.1} parent=1 // pred_fallthru
      _
    // Predicated region
    $region26: #{tpu_custom_call.1} parent=1 // pred_check
      _
    $region27: #{tpu_custom_call.1} parent=1 // pred_check_branch
      %56 = sbr.rel (0) target = $region29
    $region28: #{tpu_custom_call.1} parent=1 // pred_region
      %57 = dma.done [#allocation7], 384
    $region29: #{tpu_custom_call.1} parent=1 // pred_fallthru
      _
    %v58 = vld [vmem:[#allocation3] sm:$0xff]
    %v59 = vld [vmem:[#allocation6] sm:$0xff]
    %v60 = vld [vmem:[#allocation6 + $0x8] sm:$0xff]
    %v61 = vld [vmem:[#allocation6 + $0x10] sm:$0xff]
    %v62 = vld [vmem:[#allocation6 + $0x18] sm:$0xff]
    %v63 = vld [vmem:[#allocation6 + $0x20] sm:$0xff]
    %v64 = vld [vmem:[#allocation6 + $0x28] sm:$0xff]
    %v65 = vld [vmem:[#allocation6 + $0x30] sm:$0xff]
    %v66 = vld [vmem:[#allocation6 + $0x38] sm:$0xff]
    %v67 = vld [vmem:[#allocation6 + $0x40] sm:$0xff]
    %v68 = vld [vmem:[#allocation6 + $0x48] sm:$0xff]
    %v69 = vld [vmem:[#allocation6 + $0x50] sm:$0xff]
    %v70 = vld [vmem:[#allocation6 + $0x58] sm:$0xff]
    %v71 = vld [vmem:[#allocation6 + $0x60] sm:$0xff]
    %v72 = vld [vmem:[#allocation6 + $0x68] sm:$0xff]
    %v73 = vld [vmem:[#allocation6 + $0x70] sm:$0xff]
    %v74 = vld [vmem:[#allocation6 + $0x78] sm:$0xff]
    %75 = vmatprep.subr.mxu0 0.0
    %76 = vmatpush1.msra.mxu0 %v59
    %77 = vmatprep.subr.mxu0 0.0
    %78 = vmatpush1.msra.mxu0 %v60
    %79 = vmatprep.subr.mxu0 0.0
    %80 = vmatpush1.msra.mxu0 %v61
    %81 = vmatprep.subr.mxu0 0.0
    %82 = vmatpush1.msra.mxu0 %v62
    %83 = vmatprep.subr.mxu0 0.0
    %84 = vmatpush1.msra.mxu0 %v63
    %85 = vmatprep.subr.mxu0 0.0
    %86 = vmatpush1.msra.mxu0 %v64
    %87 = vmatprep.subr.mxu0 0.0
    %88 = vmatpush1.msra.mxu0 %v65
    %89 = vmatprep.subr.mxu0 0.0
    %90 = vmatpush1.msra.mxu0 %v66
    %91 = vmatprep.subr.mxu0 0.0
    %92 = vmatpush1.msra.mxu0 %v67
    %93 = vmatprep.subr.mxu0 0.0
    %94 = vmatpush1.msra.mxu0 %v68
    %95 = vmatprep.subr.mxu0 0.0
    %96 = vmatpush1.msra.mxu0 %v69
    %97 = vmatprep.subr.mxu0 0.0
    %98 = vmatpush1.msra.mxu0 %v70
    %99 = vmatprep.subr.mxu0 0.0
    %100 = vmatpush1.msra.mxu0 %v71
    %101 = vmatprep.subr.mxu0 0.0
    %102 = vmatpush1.msra.mxu0 %v72
    %103 = vmatprep.subr.mxu0 0.0
    %104 = vmatpush1.msra.mxu0 %v73
    %105 = vmatprep.subr.mxu0 0.0
    %106 = vmatpush1.msra.mxu0 %v74
    %107 = vmatprep.subr.mxu0 0.0
    %108 = vmatpush1.msra.mxu0 0.0
    %109 = vmatprep.subr.mxu0 0.0
    %110 = vmatpush1.msra.mxu0 0.0
    %111 = vmatprep.subr.mxu0 0.0
    %112 = vmatpush1.msra.mxu0 0.0
    %113 = vmatprep.subr.mxu0 0.0
    %114 = vmatpush1.msra.mxu0 0.0
    %115 = vmatprep.subr.mxu0 0.0
    %116 = vmatpush1.msra.mxu0 0.0
    %117 = vmatprep.subr.mxu0 0.0
    %118 = vmatpush1.msra.mxu0 0.0
    %119 = vmatprep.subr.mxu0 0.0
    %120 = vmatpush1.msra.mxu0 0.0
    %121 = vmatprep.subr.mxu0 0.0
    %122 = vmatpush1.msra.mxu0 0.0
    %123 = vmatprep.subr.mxu0 0.0
    %124 = vmatpush1.msra.mxu0 0.0
    %125 = vmatprep.subr.mxu0 0.0
    %126 = vmatpush1.msra.mxu0 0.0
    %127 = vmatprep.subr.mxu0 0.0
    %128 = vmatpush1.msra.mxu0 0.0
    %129 = vmatprep.subr.mxu0 0.0
    %130 = vmatpush1.msra.mxu0 0.0
    %131 = vmatprep.subr.mxu0 0.0
    %132 = vmatpush1.msra.mxu0 0.0
    %133 = vmatprep.subr.mxu0 0.0
    %134 = vmatpush1.msra.mxu0 0.0
    %135 = vmatprep.subr.mxu0 0.0
    %136 = vmatpush1.msra.mxu0 0.0
    %137 = vmatprep.subr.mxu0 0.0
    %138 = vmatpush1.msra.mxu0 0.0
    %139 = vmatprep.mubr.f32.mxu0 0.0
    %140 = vmatmul.mubr.f32.gmra.mrb[0].mxu0 %v58
    %v141 = vpop.f32.mrb[0].mxu0
    %v142 = vadd.f32 0.0, %v141
    %v143 = vpop.f32.mrb[0].mxu0
    %144 = vdwg.mxu0
    %v145 = vld [vmem:[#allocation8] sm:$0xff]
    %s146 = scalar_lea.vmem [#allocation6], 128
    %v147 = vld [vmem:[%s146] sm:$0xff]
    %v148 = vld [vmem:[%s146 + $0x8] sm:$0xff]
    %v149 = vld [vmem:[%s146 + $0x10] sm:$0xff]
    %v150 = vld [vmem:[%s146 + $0x18] sm:$0xff]
    %v151 = vld [vmem:[%s146 + $0x20] sm:$0xff]
    %v152 = vld [vmem:[%s146 + $0x28] sm:$0xff]
    %v153 = vld [vmem:[%s146 + $0x30] sm:$0xff]
    %v154 = vld [vmem:[%s146 + $0x38] sm:$0xff]
    %v155 = vld [vmem:[%s146 + $0x40] sm:$0xff]
    %v156 = vld [vmem:[%s146 + $0x48] sm:$0xff]
    %v157 = vld [vmem:[%s146 + $0x50] sm:$0xff]
    %v158 = vld [vmem:[%s146 + $0x58] sm:$0xff]
    %v159 = vld [vmem:[%s146 + $0x60] sm:$0xff]
    %v160 = vld [vmem:[%s146 + $0x68] sm:$0xff]
    %v161 = vld [vmem:[%s146 + $0x70] sm:$0xff]
    %v162 = vld [vmem:[%s146 + $0x78] sm:$0xff]
    %163 = vmatprep.subr.mxu0 0.0
    %164 = vmatpush1.msra.mxu0 %v147
    %165 = vmatprep.subr.mxu0 0.0
    %166 = vmatpush1.msra.mxu0 %v148
    %167 = vmatprep.subr.mxu0 0.0
    %168 = vmatpush1.msra.mxu0 %v149
    %169 = vmatprep.subr.mxu0 0.0
    %170 = vmatpush1.msra.mxu0 %v150
    %171 = vmatprep.subr.mxu0 0.0
    %172 = vmatpush1.msra.mxu0 %v151
    %173 = vmatprep.subr.mxu0 0.0
    %174 = vmatpush1.msra.mxu0 %v152
    %175 = vmatprep.subr.mxu0 0.0
    %176 = vmatpush1.msra.mxu0 %v153
    %177 = vmatprep.subr.mxu0 0.0
    %178 = vmatpush1.msra.mxu0 %v154
    %179 = vmatprep.subr.mxu0 0.0
    %180 = vmatpush1.msra.mxu0 %v155
    %181 = vmatprep.subr.mxu0 0.0
    %182 = vmatpush1.msra.mxu0 %v156
    %183 = vmatprep.subr.mxu0 0.0
    %184 = vmatpush1.msra.mxu0 %v157
    %185 = vmatprep.subr.mxu0 0.0
    %186 = vmatpush1.msra.mxu0 %v158
    %187 = vmatprep.subr.mxu0 0.0
    %188 = vmatpush1.msra.mxu0 %v159
    %189 = vmatprep.subr.mxu0 0.0
    %190 = vmatpush1.msra.mxu0 %v160
    %191 = vmatprep.subr.mxu0 0.0
    %192 = vmatpush1.msra.mxu0 %v161
    %193 = vmatprep.subr.mxu0 0.0
    %194 = vmatpush1.msra.mxu0 %v162
    %195 = vmatprep.subr.mxu0 0.0
    %196 = vmatpush1.msra.mxu0 0.0
    %197 = vmatprep.subr.mxu0 0.0
    %198 = vmatpush1.msra.mxu0 0.0
    %199 = vmatprep.subr.mxu0 0.0
    %200 = vmatpush1.msra.mxu0 0.0
    %201 = vmatprep.subr.mxu0 0.0
    %202 = vmatpush1.msra.mxu0 0.0
    %203 = vmatprep.subr.mxu0 0.0
    %204 = vmatpush1.msra.mxu0 0.0
    %205 = vmatprep.subr.mxu0 0.0
    %206 = vmatpush1.msra.mxu0 0.0
    %207 = vmatprep.subr.mxu0 0.0
    %208 = vmatpush1.msra.mxu0 0.0
    %209 = vmatprep.subr.mxu0 0.0
    %210 = vmatpush1.msra.mxu0 0.0
    %211 = vmatprep.subr.mxu0 0.0
    %212 = vmatpush1.msra.mxu0 0.0
    %213 = vmatprep.subr.mxu0 0.0
    %214 = vmatpush1.msra.mxu0 0.0
    %215 = vmatprep.subr.mxu0 0.0
    %216 = vmatpush1.msra.mxu0 0.0
    %217 = vmatprep.subr.mxu0 0.0
    %218 = vmatpush1.msra.mxu0 0.0
    %219 = vmatprep.subr.mxu0 0.0
    %220 = vmatpush1.msra.mxu0 0.0
    %221 = vmatprep.subr.mxu0 0.0
    %222 = vmatpush1.msra.mxu0 0.0
    %223 = vmatprep.subr.mxu0 0.0
    %224 = vmatpush1.msra.mxu0 0.0
    %225 = vmatprep.subr.mxu0 0.0
    %226 = vmatpush1.msra.mxu0 0.0
    %227 = vmatprep.mubr.f32.mxu0 0.0
    %228 = vmatmul.mubr.f32.gmra.mrb[0].mxu0 %v58
    %v229 = vpop.f32.mrb[0].mxu0
    %v230 = vadd.f32 0.0, %v229
    %v231 = vpop.f32.mrb[0].mxu0
    %232 = vdwg.mxu0
    %s233 = scalar_lea.vmem [#allocation8], 8
    %v234 = vld [vmem:[%s233] sm:$0xff]
    %vm235 = vcmask 64512
    %v237 = vsel %vm235, %v234, 0
    %239 = vmatprep.subr.mxu0 0.0
    %240 = vmatpush1.msra.mxu0 %v230
    %241 = vmatprep.subr.mxu0 0.0
    %242 = vmatpush1.msra.mxu0 0.0
    %243 = vmatprep.subr.mxu0 0.0
    %244 = vmatpush1.msra.mxu0 0.0
    %245 = vmatprep.subr.mxu0 0.0
    %246 = vmatpush1.msra.mxu0 0.0
    %247 = vmatprep.subr.mxu0 0.0
    %248 = vmatpush1.msra.mxu0 0.0
    %249 = vmatprep.subr.mxu0 0.0
    %250 = vmatpush1.msra.mxu0 0.0
    %251 = vmatprep.subr.mxu0 0.0
    %252 = vmatpush1.msra.mxu0 0.0
    %253 = vmatprep.subr.mxu0 0.0
    %254 = vmatpush1.msra.mxu0 0.0
    %255 = vmatprep.subr.mxu0 0.0
    %256 = vmatpush1.msra.mxu0 0.0
    %257 = vmatprep.subr.mxu0 0.0
    %258 = vmatpush1.msra.mxu0 0.0
    %259 = vmatprep.subr.mxu0 0.0
    %260 = vmatpush1.msra.mxu0 0.0
    %261 = vmatprep.subr.mxu0 0.0
    %262 = vmatpush1.msra.mxu0 0.0
    %263 = vmatprep.subr.mxu0 0.0
    %264 = vmatpush1.msra.mxu0 0.0
    %265 = vmatprep.subr.mxu0 0.0
    %266 = vmatpush1.msra.mxu0 0.0
    %267 = vmatprep.subr.mxu0 0.0
    %268 = vmatpush1.msra.mxu0 0.0
    %269 = vmatprep.subr.mxu0 0.0
    %270 = vmatpush1.msra.mxu0 0.0
    %271 = vmatprep.subr.mxu0 0.0
    %272 = vmatpush1.msra.mxu0 0.0
    %273 = vmatprep.subr.mxu0 0.0
    %274 = vmatpush1.msra.mxu0 0.0
    %275 = vmatprep.subr.mxu0 0.0
    %276 = vmatpush1.msra.mxu0 0.0
    %277 = vmatprep.subr.mxu0 0.0
    %278 = vmatpush1.msra.mxu0 0.0
    %279 = vmatprep.subr.mxu0 0.0
    %280 = vmatpush1.msra.mxu0 0.0
    %281 = vmatprep.subr.mxu0 0.0
    %282 = vmatpush1.msra.mxu0 0.0
    %283 = vmatprep.subr.mxu0 0.0
    %284 = vmatpush1.msra.mxu0 0.0
    %285 = vmatprep.subr.mxu0 0.0
    %286 = vmatpush1.msra.mxu0 0.0
    %287 = vmatprep.subr.mxu0 0.0
    %288 = vmatpush1.msra.mxu0 0.0
    %289 = vmatprep.subr.mxu0 0.0
    %290 = vmatpush1.msra.mxu0 0.0
    %291 = vmatprep.subr.mxu0 0.0
    %292 = vmatpush1.msra.mxu0 0.0
    %293 = vmatprep.subr.mxu0 0.0
    %294 = vmatpush1.msra.mxu0 0.0
    %295 = vmatprep.subr.mxu0 0.0
    %296 = vmatpush1.msra.mxu0 0.0
    %297 = vmatprep.subr.mxu0 0.0
    %298 = vmatpush1.msra.mxu0 0.0
    %299 = vmatprep.subr.mxu0 0.0
    %300 = vmatpush1.msra.mxu0 0.0
    %301 = vmatprep.subr.mxu0 0.0
    %302 = vmatpush1.msra.mxu0 0.0
    %303 = vmatprep.mubr.f32.mxu0 0.0
    %304 = vmatmul.mubr.f32.gmra.mrb[0].mxu0 %v237
    %v305 = vpop.f32.mrb[0].mxu0
    %v306 = vadd.f32 0.0, %v305
    %v307 = vpop.f32.mrb[0].mxu0
    %308 = vdwg.mxu0
    %v310 = vsel %vm235, %v145, 0
    %312 = vmatprep.subr.mxu0 0.0
    %313 = vmatpush1.msra.mxu0 %v142
    %314 = vmatprep.subr.mxu0 0.0
    %315 = vmatpush1.msra.mxu0 0.0
    %316 = vmatprep.subr.mxu0 0.0
    %317 = vmatpush1.msra.mxu0 0.0
    %318 = vmatprep.subr.mxu0 0.0
    %319 = vmatpush1.msra.mxu0 0.0
    %320 = vmatprep.subr.mxu0 0.0
    %321 = vmatpush1.msra.mxu0 0.0
    %322 = vmatprep.subr.mxu0 0.0
    %323 = vmatpush1.msra.mxu0 0.0
    %324 = vmatprep.subr.mxu0 0.0
    %325 = vmatpush1.msra.mxu0 0.0
    %326 = vmatprep.subr.mxu0 0.0
    %327 = vmatpush1.msra.mxu0 0.0
    %328 = vmatprep.subr.mxu0 0.0
    %329 = vmatpush1.msra.mxu0 0.0
    %330 = vmatprep.subr.mxu0 0.0
    %331 = vmatpush1.msra.mxu0 0.0
    %332 = vmatprep.subr.mxu0 0.0
    %333 = vmatpush1.msra.mxu0 0.0
    %334 = vmatprep.subr.mxu0 0.0
    %335 = vmatpush1.msra.mxu0 0.0
    %336 = vmatprep.subr.mxu0 0.0
    %337 = vmatpush1.msra.mxu0 0.0
    %338 = vmatprep.subr.mxu0 0.0
    %339 = vmatpush1.msra.mxu0 0.0
    %340 = vmatprep.subr.mxu0 0.0
    %341 = vmatpush1.msra.mxu0 0.0
    %342 = vmatprep.subr.mxu0 0.0
    %343 = vmatpush1.msra.mxu0 0.0
    %344 = vmatprep.subr.mxu0 0.0
    %345 = vmatpush1.msra.mxu0 0.0
    %346 = vmatprep.subr.mxu0 0.0
    %347 = vmatpush1.msra.mxu0 0.0
    %348 = vmatprep.subr.mxu0 0.0
    %349 = vmatpush1.msra.mxu0 0.0
    %350 = vmatprep.subr.mxu0 0.0
    %351 = vmatpush1.msra.mxu0 0.0
    %352 = vmatprep.subr.mxu0 0.0
    %353 = vmatpush1.msra.mxu0 0.0
    %354 = vmatprep.subr.mxu0 0.0
    %355 = vmatpush1.msra.mxu0 0.0
    %356 = vmatprep.subr.mxu0 0.0
    %357 = vmatpush1.msra.mxu0 0.0
    %358 = vmatprep.subr.mxu0 0.0
    %359 = vmatpush1.msra.mxu0 0.0
    %360 = vmatprep.subr.mxu0 0.0
    %361 = vmatpush1.msra.mxu0 0.0
    %362 = vmatprep.subr.mxu0 0.0
    %363 = vmatpush1.msra.mxu0 0.0
    %364 = vmatprep.subr.mxu0 0.0
    %365 = vmatpush1.msra.mxu0 0.0
    %366 = vmatprep.subr.mxu0 0.0
    %367 = vmatpush1.msra.mxu0 0.0
    %368 = vmatprep.subr.mxu0 0.0
    %369 = vmatpush1.msra.mxu0 0.0
    %370 = vmatprep.subr.mxu0 0.0
    %371 = vmatpush1.msra.mxu0 0.0
    %372 = vmatprep.subr.mxu0 0.0
    %373 = vmatpush1.msra.mxu0 0.0
    %374 = vmatprep.subr.mxu0 0.0
    %375 = vmatpush1.msra.mxu0 0.0
    %376 = vmatprep.mubr.f32.mxu0 0.0
    %377 = vmatmul.mubr.f32.gmra.mrb[0].mxu0 %v310
    %v378 = vpop.f32.mrb[0].mxu0
    %v379 = vadd.f32 %v306, %v378
    %v380 = vpop.f32.mrb[0].mxu0
    %381 = vdwg.mxu0
    %s382 = scalar_lea.vmem [#allocation6], 256
    %v383 = vld [vmem:[%s382] sm:$0xff]
    %v384 = vld [vmem:[%s382 + $0x8] sm:$0xff]
    %v385 = vld [vmem:[%s382 + $0x10] sm:$0xff]
    %v386 = vld [vmem:[%s382 + $0x18] sm:$0xff]
    %v387 = vld [vmem:[%s382 + $0x20] sm:$0xff]
    %v388 = vld [vmem:[%s382 + $0x28] sm:$0xff]
    %v389 = vld [vmem:[%s382 + $0x30] sm:$0xff]
    %v390 = vld [vmem:[%s382 + $0x38] sm:$0xff]
    %v391 = vld [vmem:[%s382 + $0x40] sm:$0xff]
    %v392 = vld [vmem:[%s382 + $0x48] sm:$0xff]
    %v393 = vld [vmem:[%s382 + $0x50] sm:$0xff]
    %v394 = vld [vmem:[%s382 + $0x58] sm:$0xff]
    %v395 = vld [vmem:[%s382 + $0x60] sm:$0xff]
    %v396 = vld [vmem:[%s382 + $0x68] sm:$0xff]
    %v397 = vld [vmem:[%s382 + $0x70] sm:$0xff]
    %v398 = vld [vmem:[%s382 + $0x78] sm:$0xff]
    %399 = vmatprep.subr.mxu0 0.0
    %400 = vmatpush1.msra.mxu0 %v383
    %401 = vmatprep.subr.mxu0 0.0
    %402 = vmatpush1.msra.mxu0 %v384
    %403 = vmatprep.subr.mxu0 0.0
    %404 = vmatpush1.msra.mxu0 %v385
    %405 = vmatprep.subr.mxu0 0.0
    %406 = vmatpush1.msra.mxu0 %v386
    %407 = vmatprep.subr.mxu0 0.0
    %408 = vmatpush1.msra.mxu0 %v387
    %409 = vmatprep.subr.mxu0 0.0
    %410 = vmatpush1.msra.mxu0 %v388
    %411 = vmatprep.subr.mxu0 0.0
    %412 = vmatpush1.msra.mxu0 %v389
    %413 = vmatprep.subr.mxu0 0.0
    %414 = vmatpush1.msra.mxu0 %v390
    %415 = vmatprep.subr.mxu0 0.0
    %416 = vmatpush1.msra.mxu0 %v391
    %417 = vmatprep.subr.mxu0 0.0
    %418 = vmatpush1.msra.mxu0 %v392
    %419 = vmatprep.subr.mxu0 0.0
    %420 = vmatpush1.msra.mxu0 %v393
    %421 = vmatprep.subr.mxu0 0.0
    %422 = vmatpush1.msra.mxu0 %v394
    %423 = vmatprep.subr.mxu0 0.0
    %424 = vmatpush1.msra.mxu0 %v395
    %425 = vmatprep.subr.mxu0 0.0
    %426 = vmatpush1.msra.mxu0 %v396
    %427 = vmatprep.subr.mxu0 0.0
    %428 = vmatpush1.msra.mxu0 %v397
    %429 = vmatprep.subr.mxu0 0.0
    %430 = vmatpush1.msra.mxu0 %v398
    %431 = vmatprep.subr.mxu0 0.0
    %432 = vmatpush1.msra.mxu0 0.0
    %433 = vmatprep.subr.mxu0 0.0
    %434 = vmatpush1.msra.mxu0 0.0
    %435 = vmatprep.subr.mxu0 0.0
    %436 = vmatpush1.msra.mxu0 0.0
    %437 = vmatprep.subr.mxu0 0.0
    %438 = vmatpush1.msra.mxu0 0.0
    %439 = vmatprep.subr.mxu0 0.0
    %440 = vmatpush1.msra.mxu0 0.0
    %441 = vmatprep.subr.mxu0 0.0
    %442 = vmatpush1.msra.mxu0 0.0
    %443 = vmatprep.subr.mxu0 0.0
    %444 = vmatpush1.msra.mxu0 0.0
    %445 = vmatprep.subr.mxu0 0.0
    %446 = vmatpush1.msra.mxu0 0.0
    %447 = vmatprep.subr.mxu0 0.0
    %448 = vmatpush1.msra.mxu0 0.0
    %449 = vmatprep.subr.mxu0 0.0
    %450 = vmatpush1.msra.mxu0 0.0
    %451 = vmatprep.subr.mxu0 0.0
    %452 = vmatpush1.msra.mxu0 0.0
    %453 = vmatprep.subr.mxu0 0.0
    %454 = vmatpush1.msra.mxu0 0.0
    %455 = vmatprep.subr.mxu0 0.0
    %456 = vmatpush1.msra.mxu0 0.0
    %457 = vmatprep.subr.mxu0 0.0
    %458 = vmatpush1.msra.mxu0 0.0
    %459 = vmatprep.subr.mxu0 0.0
    %460 = vmatpush1.msra.mxu0 0.0
    %461 = vmatprep.subr.mxu0 0.0
    %462 = vmatpush1.msra.mxu0 0.0
    %463 = vmatprep.mubr.f32.mxu0 0.0
    %464 = vmatmul.mubr.f32.gmra.mrb[0].mxu0 %v58
    %v465 = vpop.f32.mrb[0].mxu0
    %v466 = vadd.f32 0.0, %v465
    %v467 = vpop.f32.mrb[0].mxu0
    %468 = vdwg.mxu0
    %s469 = scalar_lea.vmem [#allocation8], 16
    %v470 = vld [vmem:[%s469] sm:$0xff]
    %v472 = vsel %vm235, %v470, 0
    %474 = vmatprep.subr.mxu0 0.0
    %475 = vmatpush1.msra.mxu0 %v466
    %476 = vmatprep.subr.mxu0 0.0
    %477 = vmatpush1.msra.mxu0 0.0
    %478 = vmatprep.subr.mxu0 0.0
    %479 = vmatpush1.msra.mxu0 0.0
    %480 = vmatprep.subr.mxu0 0.0
    %481 = vmatpush1.msra.mxu0 0.0
    %482 = vmatprep.subr.mxu0 0.0
    %483 = vmatpush1.msra.mxu0 0.0
    %484 = vmatprep.subr.mxu0 0.0
    %485 = vmatpush1.msra.mxu0 0.0
    %486 = vmatprep.subr.mxu0 0.0
    %487 = vmatpush1.msra.mxu0 0.0
    %488 = vmatprep.subr.mxu0 0.0
    %489 = vmatpush1.msra.mxu0 0.0
    %490 = vmatprep.subr.mxu0 0.0
    %491 = vmatpush1.msra.mxu0 0.0
    %492 = vmatprep.subr.mxu0 0.0
    %493 = vmatpush1.msra.mxu0 0.0
    %494 = vmatprep.subr.mxu0 0.0
    %495 = vmatpush1.msra.mxu0 0.0
    %496 = vmatprep.subr.mxu0 0.0
    %497 = vmatpush1.msra.mxu0 0.0
    %498 = vmatprep.subr.mxu0 0.0
    %499 = vmatpush1.msra.mxu0 0.0
    %500 = vmatprep.subr.mxu0 0.0
    %501 = vmatpush1.msra.mxu0 0.0
    %502 = vmatprep.subr.mxu0 0.0
    %503 = vmatpush1.msra.mxu0 0.0
    %504 = vmatprep.subr.mxu0 0.0
    %505 = vmatpush1.msra.mxu0 0.0
    %506 = vmatprep.subr.mxu0 0.0
    %507 = vmatpush1.msra.mxu0 0.0
    %508 = vmatprep.subr.mxu0 0.0
    %509 = vmatpush1.msra.mxu0 0.0
    %510 = vmatprep.subr.mxu0 0.0
    %511 = vmatpush1.msra.mxu0 0.0
    %512 = vmatprep.subr.mxu0 0.0
    %513 = vmatpush1.msra.mxu0 0.0
    %514 = vmatprep.subr.mxu0 0.0
    %515 = vmatpush1.msra.mxu0 0.0
    %516 = vmatprep.subr.mxu0 0.0
    %517 = vmatpush1.msra.mxu0 0.0
    %518 = vmatprep.subr.mxu0 0.0
    %519 = vmatpush1.msra.mxu0 0.0
    %520 = vmatprep.subr.mxu0 0.0
    %521 = vmatpush1.msra.mxu0 0.0
    %522 = vmatprep.subr.mxu0 0.0
    %523 = vmatpush1.msra.mxu0 0.0
    %524 = vmatprep.subr.mxu0 0.0
    %525 = vmatpush1.msra.mxu0 0.0
    %526 = vmatprep.subr.mxu0 0.0
    %527 = vmatpush1.msra.mxu0 0.0
    %528 = vmatprep.subr.mxu0 0.0
    %529 = vmatpush1.msra.mxu0 0.0
    %530 = vmatprep.subr.mxu0 0.0
    %531 = vmatpush1.msra.mxu0 0.0
    %532 = vmatprep.subr.mxu0 0.0
    %533 = vmatpush1.msra.mxu0 0.0
    %534 = vmatprep.subr.mxu0 0.0
    %535 = vmatpush1.msra.mxu0 0.0
    %536 = vmatprep.subr.mxu0 0.0
    %537 = vmatpush1.msra.mxu0 0.0
    %538 = vmatprep.mubr.f32.mxu0 0.0
    %539 = vmatmul.mubr.f32.gmra.mrb[0].mxu0 %v472
    %v540 = vpop.f32.mrb[0].mxu0
    %v541 = vadd.f32 0.0, %v540
    %v542 = vpop.f32.mrb[0].mxu0
    %543 = vdwg.mxu0
    %v544 = vadd.f32 %v379, %v541
    %s545 = sld [smem:[#allocation2]]
    %v546 = vstv %s545
    %v547 = vadd.f32 %v544, %v546
    %v548 = vxor.u32 %v547, 2147483648
    %v549 = vmul.f32 %v548, 1.442695
    %v550 = vpow.pop %v549
    %v551 = vadd.f32 %v550, 1.0
    %v552 = vrcp.pop %v551
    %v553 = vmul.f32 1.0, %v552
    %554 = vst [vmem:[#allocation9] sm:$0xff] %v553
    // Predicated region
    $region30: #{tpu_custom_call.1} parent=1 // pred_check
      _
    $region31: #{tpu_custom_call.1} parent=1 // pred_check_branch
      %556 = sbr.rel (0) target = $region33
    $region32: #{tpu_custom_call.1} parent=1 // pred_region
      %s558 = ssub.s32 128, 128
      %559 = vsyncadd [#allocation5], %s558
      %s561 = sshll.u32 [#allocation9], 4
      %s562 = int_to_ptr.vmem [resolvable:$true] %s561
      %564 = dma.vmem_to_hbm [thread:$0]  %s562, 128, %s4, [#allocation5]
    $region33: #{tpu_custom_call.1} parent=1 // pred_fallthru
      _
    // Predicated region
    $region34: #{tpu_custom_call.1} parent=1 // pred_check
      _
    $region35: #{tpu_custom_call.1} parent=1 // pred_check_branch
      %566 = sbr.rel (0) target = $region37
    $region36: #{tpu_custom_call.1} parent=1 // pred_region
      %567 = dma.done [#allocation5], 128
    $region37: #{tpu_custom_call.1} parent=1 // pred_fallthru
      _
    %568 = vsyncpa [#allocation4], 1
    %569 = vsyncpa [#allocation7], 1
    %570 = vsyncpa [#allocation5], 1

</llo_original>
